<compile_context>
chip_gen: v7x
topology: tpu7x:2x2x1
jax: 0.10.0
libtpu: 0.0.40
codegen_flags: <defaults>
</compile_context>

<pallas_src>
import functools

import jax
import jax.numpy as jnp
from jax import lax
from jax.experimental import pallas as pl
from jax.experimental.pallas import tpu as pltpu

_LANE = 128
_SUBLANE = 8
_MAX_BATCH_TILE = 128   # keep state + W (16 vregs) + bias well under 64 live vregs


def _round_up(x, m):
    return (x + m - 1) // m * m


def _cdiv(a, b):
    return -(-a // b)


def _ss1_fused_kernel(x_ref, wt_ref, b_ref, o_ref, *, num_steps):
    """state_{t+1} = clamp(state_t @ W^T + b, 0, 1), iterated num_steps times in vregs.

    The clamp is applied every step before feedback, matching the per-step
    Simulator.forward reference exactly (zero padding keeps the math exact).
    """
    w = wt_ref[...]        # (Np, Np) f32: 16 vregs at Np=128, loaded once
    bias = b_ref[...]      # (1, Np): narrow — the VPU sublane-broadcasts during the
                           # add, so we never materialize a (batch_tile, Np) copy.

    def step(_, state):
        y = jnp.dot(state, w, preferred_element_type=jnp.float32) + bias
        return jnp.clip(y, 0.0, 1.0)

    state = x_ref[...].astype(jnp.float32)
    # Partial unroll: fully unrolled for short T, 8-wide unroll for long T so the
    # LLO scheduler sees across iterations (rolled visible loops measured ~-35%).
    state = lax.fori_loop(0, num_steps, step, state,
                          unroll=max(1, min(num_steps, 8)))
    o_ref[...] = state.astype(o_ref.dtype)


def _choose_batch_tiling(batch):
    """Pick (batch_tile, padded_batch): tile % 8 == 0, tile <= 128, tile | padded_batch.

    For batch >= 16 we force >= 2 grid steps so the 'parallel' batch axis can be
    split across the two TensorCores on v7x (harmless on single-TC v5e/v6e).
    """
    b8 = _round_up(batch, _SUBLANE)
    if b8 < 2 * _SUBLANE:
        return b8, b8
    grid = max(2, _cdiv(b8, _MAX_BATCH_TILE))
    tile = _round_up(_cdiv(b8, grid), _SUBLANE)    # <= 128 by construction
    return tile, tile * grid


def _ss1_recurrence(x_p, wt_p, b_p, *, num_steps, batch_tile):
    """Single pallas_call running the whole T-step recurrence on padded operands."""
    Bp, Np = x_p.shape
    kernel = functools.partial(_ss1_fused_kernel, num_steps=num_steps)
    return pl.pallas_call(
        kernel,
        out_shape=jax.ShapeDtypeStruct((Bp, Np), jnp.float32),
        grid=(Bp // batch_tile,),
        in_specs=[
            pl.BlockSpec((batch_tile, Np), lambda i: (i, 0)),   # state tile
            # W^T and b have constant block indices -> fetched once and kept
            # resident across batch tiles (64 KiB + 0.5 KiB: VMEM is a non-issue
            # at Np=128 on every generation, so no pipeline_mode tuning needed).
            pl.BlockSpec((Np, Np), lambda i: (0, 0)),
            pl.BlockSpec((1, Np), lambda i: (0, 0)),
        ],
        out_specs=pl.BlockSpec((batch_tile, Np), lambda i: (i, 0)),
        # x_p is an intermediate created inside the same jit, so XLA can reuse its
        # HBM buffer for the output without a defensive copy.
        input_output_aliases={0: 0},
        compiler_params=pltpu.CompilerParams(
            dimension_semantics=("parallel",),
        ),
    )(x_p, wt_p, b_p)


@functools.partial(jax.jit, static_argnames=("num_steps",))
def simulator_forward(x, W, b, *, num_steps=1):
    """Simulator.forward applied `num_steps` times, fully fused in one XLA program.

    num_steps=1 reproduces Simulator.forward(x); num_steps=T fuses the recurrence
    of Simulator.simulate into a single kernel launch (state stays on-chip).
    Batch more independent simulator rows per call when possible — MXU rows are
    nearly free up to the 128-row tile, so throughput scales almost linearly.

    x : (B, N) float32   batch of independent simulator state vectors
    W : (N, N) float32   (PyTorch nn.Linear convention: out x in)
    b : (N,)   float32
    """
    B, N = x.shape
    Np = _round_up(N, _LANE)
    batch_tile, Bp = _choose_batch_tiling(B)

    # Pad + transpose inside the jit (no separate host-side dispatches).  Zero
    # padding keeps the recurrence exact on the first N columns; padded batch
    # rows compute clip(b, 0, 1) but are sliced off below.
    wt_p = jnp.zeros((Np, Np), jnp.float32).at[:N, :N].set(W.astype(jnp.float32).T)
    b_p = jnp.zeros((1, Np), jnp.float32).at[0, :N].set(b.astype(jnp.float32))
    x_p = jnp.zeros((Bp, Np), jnp.float32).at[:B, :N].set(x.astype(jnp.float32))

    out_p = _ss1_recurrence(x_p, wt_p, b_p, num_steps=num_steps, batch_tile=batch_tile)
    return out_p[:B, :N]


# ----------------------------- pure-JAX reference -----------------------------

def _reference_step(x, W, b):
    return jnp.clip(x @ W.T + b[None, :], 0.0, 1.0)


def _reference_run(x, W, b, T):
    o = x
    for _ in range(T):
        o = _reference_step(o, W, b)
    return o


if __name__ == "__main__":
    # Small synthetic Turing-machine description: s states, p stacks.
    s = 4                 # number of TM states (|description.states|)
    p = 2                 # Simulator._p
    N = s + 3 * 4 * p     # = 28, the SiegelmannSontag1 state-vector width

    key = jax.random.PRNGKey(0)
    kw, kb, kx = jax.random.split(key, 3)

    # Deterministic synthetic parameters (correct shapes for the SS1 cell).
    W = jax.random.normal(kw, (N, N), jnp.float32) * 0.1
    b = jax.random.normal(kb, (N,), jnp.float32) * 0.1

    def make_initial_state(B, noise_key):
        # Mimics Simulator.simulate initialization for version=1: zeros, state-0
        # neuron = 1, first stack neuron holds a Cantor encoding, tail neurons
        # hold the "low value" -8*p^2 + 2.
        x = jnp.zeros((B, N), jnp.float32)
        x = x.at[:, 0].set(1.0)
        x = x.at[:, s].set(0.75 + 0.1875)          # delta("01"), base 4, p=1/2
        low_value = -8.0 * p * p + 2.0
        x = x.at[:, s + 4 * p:].set(low_value)
        return x + 0.01 * jax.random.normal(noise_key, (B, N), jnp.float32)

    # --- single forward step, small batch (matches Simulator.forward) ---
    x2 = make_initial_state(2, kx)
    out1 = jax.block_until_ready(simulator_forward(x2, W, b, num_steps=1))
    assert out1.shape == (2, N)
    assert jnp.allclose(out1, _reference_step(x2, W, b), atol=2e-5), "single-step mismatch"

    # --- fused multi-step recurrence (matches Simulator.simulate's loop) ---
    for T in (6, 20):     # exercises both the fully-unrolled and 8-wide partial-unroll paths
        outT = jax.block_until_ready(simulator_forward(x2, W, b, num_steps=T))
        assert jnp.allclose(outT, _reference_run(x2, W, b, T), atol=1e-4), f"{T}-step mismatch"

    # --- batched simulations: multi-tile grid (2 tiles -> both v7x TensorCores) ---
    x16 = make_initial_state(16, jax.random.PRNGKey(1))
    out16 = jax.block_until_ready(simulator_forward(x16, W, b, num_steps=12))
    assert out16.shape == (16, N)
    assert jnp.allclose(out16, _reference_run(x16, W, b, 12), atol=1e-4), "batched mismatch"

    print("KERNEL_OK")
</pallas_src>

<mosaic_0001>
module attributes {stable_mosaic.version = 11 : i64} {
  func.func @_ss1_fused_kernel(%arg0: i32, %arg1: memref<8x128xf32, #tpu.memory_space<vmem>>, %arg2: memref<128x128xf32, #tpu.memory_space<vmem>>, %arg3: memref<1x128xf32, #tpu.memory_space<vmem>>, %arg4: memref<8x128xf32, #tpu.memory_space<vmem>>) attributes {dimension_semantics = [#tpu.dimension_semantics<parallel>], iteration_bounds = array<i64: 1>, scalar_prefetch = 0 : i64, scratch_operands = 0 : i64, tpu.core_type = #tpu.core_type<tc>, window_params = [{transform_indices = @transform_0, window_bounds = array<i64: 8, 128>}, {pipeline_mode = #tpu.pipeline_mode<synchronous>, transform_indices = @transform_1, window_bounds = array<i64: 128, 128>}, {pipeline_mode = #tpu.pipeline_mode<synchronous>, transform_indices = @transform_2, window_bounds = array<i64: 1, 128>}, {transform_indices = @transform_3, window_bounds = array<i64: 8, 128>}]} {
    %c0 = arith.constant 0 : index
    %c0_0 = arith.constant 0 : index
    %0 = vector.load %arg2[%c0, %c0_0] : memref<128x128xf32, #tpu.memory_space<vmem>>, vector<128x128xf32>
    %c0_1 = arith.constant 0 : index
    %c0_2 = arith.constant 0 : index
    %1 = vector.load %arg3[%c0_1, %c0_2] : memref<1x128xf32, #tpu.memory_space<vmem>>, vector<1x128xf32>
    %c0_3 = arith.constant 0 : index
    %c0_4 = arith.constant 0 : index
    %2 = vector.load %arg1[%c0_3, %c0_4] : memref<8x128xf32, #tpu.memory_space<vmem>>, vector<8x128xf32>
    %c0_i32 = arith.constant 0 : i32
    %cst = arith.constant dense<0.000000e+00> : vector<8x128xf32>
    %3 = tpu.matmul %2, %0, %cst {dimension_numbers = #tpu.dot_dimension_numbers<[1], [0], [0], [1], [0, 0, 1, 1], [], []>} : vector<8x128xf32>, vector<128x128xf32>, vector<8x128xf32> -> vector<8x128xf32>
    %4 = vector.broadcast %1 : vector<1x128xf32> to vector<8x128xf32>
    %5 = arith.addf %3, %4 : vector<8x128xf32>
    %cst_5 = arith.constant 0.000000e+00 : f32
    %cst_6 = arith.constant 1.000000e+00 : f32
    %6 = vector.broadcast %cst_5 : f32 to vector<8x128xf32>
    %7 = arith.maximumf %6, %5 : vector<8x128xf32>
    %8 = vector.broadcast %cst_6 : f32 to vector<8x128xf32>
    %9 = arith.minimumf %8, %7 : vector<8x128xf32>
    %c0_7 = arith.constant 0 : index
    %c0_8 = arith.constant 0 : index
    %10 = vector.load %arg4[%c0_7, %c0_8] : memref<8x128xf32, #tpu.memory_space<vmem>>, vector<8x128xf32>
    tpu.vector_store %arg4[%c0_7, %c0_8], %9 {strides = array<i32>} : memref<8x128xf32, #tpu.memory_space<vmem>>, vector<8x128xf32>,
    return
  }
  func.func @transform_0(%arg0: i32) -> (i32, i32) {
    %c0_i32 = arith.constant 0 : i32
    %c0_i32_0 = arith.constant 0 : i32
    return %arg0, %c0_i32 : i32, i32
  }
  func.func @transform_1(%arg0: i32) -> (i32, i32) {
    %c0_i32 = arith.constant 0 : i32
    %c0_i32_0 = arith.constant 0 : i32
    %c0_i32_1 = arith.constant 0 : i32
    return %c0_i32, %c0_i32_0 : i32, i32
  }
  func.func @transform_2(%arg0: i32) -> (i32, i32) {
    %c0_i32 = arith.constant 0 : i32
    %c0_i32_0 = arith.constant 0 : i32
    %c0_i32_1 = arith.constant 0 : i32
    return %c0_i32, %c0_i32_0 : i32, i32
  }
  func.func @transform_3(%arg0: i32) -> (i32, i32) {
    %c0_i32 = arith.constant 0 : i32
    %c0_i32_0 = arith.constant 0 : i32
    return %arg0, %c0_i32 : i32, i32
  }
}

</mosaic_0001>

<llo_original>
// kernel: simulator_forward.1
$region0: #{simulator_forward.1}
  #allocation0 [shape = 'u32[]', space=smem, size = 0x4, offset = 0x4, fixed_abs, tag = 'smem constant byte address 0x4 - core index']
  #allocation1 [shape = 'u32[144,128]{1,0:T(1,128)}', space=vmem, size = 0x12000, scoped, tag = 'internal scratch']
  %s0 = inlined_call_operand.vmem [shape: f32[8,128], index: 0, kind: input, shape index: {}, may-alias: {0,3}]
  %s1 = inlined_call_operand.vmem [shape: f32[128,128], index: 1, kind: input, shape index: {}]
  %s2 = inlined_call_operand.vmem [shape: f32[1,128], index: 2, kind: input, shape index: {}]
  %s3 = inlined_call_operand.vmem [shape: f32[8,128], index: 3, kind: output, shape index: {}, may-alias: {0,3}]
  %s4 = sld [smem:[#allocation0]]
  $region22: #{simulator_forward.1} parent=0
    _
  %s6 = ssub.s32 1, %s4
  %s7 = scalar_select 0, %s6, %s4
  // Predicated region
  $region2: #{simulator_forward.1} parent=0 // pred_check
    _
  $region3: #{simulator_forward.1} parent=0 // pred_check_branch
    %9 = sbr.rel (0) target = $region5
  $region4: #{simulator_forward.1} parent=0 // pred_region
    _
  $region5: #{simulator_forward.1} parent=0 // pred_fallthru
    _
  // Predicated region
  $region6: #{simulator_forward.1} parent=0 // pred_check
    _
  $region7: #{simulator_forward.1} parent=0 // pred_check_branch
    %11 = sbr.rel (0) target = $region9
  $region8: #{simulator_forward.1} parent=0 // pred_region
    _
  $region9: #{simulator_forward.1} parent=0 // pred_fallthru
    _
  // Predicated region
  $region10: #{simulator_forward.1} parent=0 // pred_check
    _
  $region11: #{simulator_forward.1} parent=0 // pred_check_branch
    %13 = sbr.rel (0) target = $region13
  $region12: #{simulator_forward.1} parent=0 // pred_region
    _
  $region13: #{simulator_forward.1} parent=0 // pred_fallthru
    _
  %v14 = vld [vmem:[%s1] sm:$0xff]
  %v15 = vld [vmem:[%s1 + $0x8] sm:$0xff]
  %v16 = vld [vmem:[%s1 + $0x10] sm:$0xff]
  %v17 = vld [vmem:[%s1 + $0x18] sm:$0xff]
  %v18 = vld [vmem:[%s1 + $0x20] sm:$0xff]
  %v19 = vld [vmem:[%s1 + $0x28] sm:$0xff]
  %v20 = vld [vmem:[%s1 + $0x30] sm:$0xff]
  %v21 = vld [vmem:[%s1 + $0x38] sm:$0xff]
  %v22 = vld [vmem:[%s1 + $0x40] sm:$0xff]
  %v23 = vld [vmem:[%s1 + $0x48] sm:$0xff]
  %v24 = vld [vmem:[%s1 + $0x50] sm:$0xff]
  %v25 = vld [vmem:[%s1 + $0x58] sm:$0xff]
  %v26 = vld [vmem:[%s1 + $0x60] sm:$0xff]
  %v27 = vld [vmem:[%s1 + $0x68] sm:$0xff]
  %v28 = vld [vmem:[%s1 + $0x70] sm:$0xff]
  %v29 = vld [vmem:[%s1 + $0x78] sm:$0xff]
  %v30 = vld [vmem:[%s2] sm:$0x1]
  %v31 = vld [vmem:[%s0] sm:$0xff]
  %v33 = vlaneseq
  %v34 = vshrl.u32 %v33, 7
  %v35 = vsub.s32 0, %v34
  %v36 = vrot.slane %v30, %v35
  %38 = vmatprep.subr.mxu0 0.0
  %39 = vmatpush1.msra.mxu0 %v14
  %40 = vmatprep.subr.mxu0 0.0
  %41 = vmatpush1.msra.mxu0 %v15
  %42 = vmatprep.subr.mxu0 0.0
  %43 = vmatpush1.msra.mxu0 %v16
  %44 = vmatprep.subr.mxu0 0.0
  %45 = vmatpush1.msra.mxu0 %v17
  %46 = vmatprep.subr.mxu0 0.0
  %47 = vmatpush1.msra.mxu0 %v18
  %48 = vmatprep.subr.mxu0 0.0
  %49 = vmatpush1.msra.mxu0 %v19
  %50 = vmatprep.subr.mxu0 0.0
  %51 = vmatpush1.msra.mxu0 %v20
  %52 = vmatprep.subr.mxu0 0.0
  %53 = vmatpush1.msra.mxu0 %v21
  %54 = vmatprep.subr.mxu0 0.0
  %55 = vmatpush1.msra.mxu0 %v22
  %56 = vmatprep.subr.mxu0 0.0
  %57 = vmatpush1.msra.mxu0 %v23
  %58 = vmatprep.subr.mxu0 0.0
  %59 = vmatpush1.msra.mxu0 %v24
  %60 = vmatprep.subr.mxu0 0.0
  %61 = vmatpush1.msra.mxu0 %v25
  %62 = vmatprep.subr.mxu0 0.0
  %63 = vmatpush1.msra.mxu0 %v26
  %64 = vmatprep.subr.mxu0 0.0
  %65 = vmatpush1.msra.mxu0 %v27
  %66 = vmatprep.subr.mxu0 0.0
  %67 = vmatpush1.msra.mxu0 %v28
  %68 = vmatprep.subr.mxu0 0.0
  %69 = vmatpush1.msra.mxu0 %v29
  %70 = vmatprep.subr.mxu0 0.0
  %71 = vmatpush1.msra.mxu0 0.0
  %72 = vmatprep.subr.mxu0 0.0
  %73 = vmatpush1.msra.mxu0 0.0
  %74 = vmatprep.subr.mxu0 0.0
  %75 = vmatpush1.msra.mxu0 0.0
  %76 = vmatprep.subr.mxu0 0.0
  %77 = vmatpush1.msra.mxu0 0.0
  %78 = vmatprep.subr.mxu0 0.0
  %79 = vmatpush1.msra.mxu0 0.0
  %80 = vmatprep.subr.mxu0 0.0
  %81 = vmatpush1.msra.mxu0 0.0
  %82 = vmatprep.subr.mxu0 0.0
  %83 = vmatpush1.msra.mxu0 0.0
  %84 = vmatprep.subr.mxu0 0.0
  %85 = vmatpush1.msra.mxu0 0.0
  %86 = vmatprep.subr.mxu0 0.0
  %87 = vmatpush1.msra.mxu0 0.0
  %88 = vmatprep.subr.mxu0 0.0
  %89 = vmatpush1.msra.mxu0 0.0
  %90 = vmatprep.subr.mxu0 0.0
  %91 = vmatpush1.msra.mxu0 0.0
  %92 = vmatprep.subr.mxu0 0.0
  %93 = vmatpush1.msra.mxu0 0.0
  %94 = vmatprep.subr.mxu0 0.0
  %95 = vmatpush1.msra.mxu0 0.0
  %96 = vmatprep.subr.mxu0 0.0
  %97 = vmatpush1.msra.mxu0 0.0
  %98 = vmatprep.subr.mxu0 0.0
  %99 = vmatpush1.msra.mxu0 0.0
  %100 = vmatprep.subr.mxu0 0.0
  %101 = vmatpush1.msra.mxu0 0.0
  %102 = vmatprep.mubr.f32.mxu0 0.0
  %103 = vmatmul.mubr.f32.gmra.mrb[0].mxu0 %v31
  %v104 = vpop.f32.mrb[0].mxu0
  %v105 = vadd.f32 %v36, %v104
  %v106 = vpop.f32.mrb[0].mxu0
  %107 = vdwg.mxu0
  %v108 = vmax.f32 %v105, 0.0
  %v109 = vmin.f32 %v108, 1.0
  %110 = vst [vmem:[%s3] sm:$0xff] %v109
  // Predicated region
  $region14: #{simulator_forward.1} parent=0 // pred_check
    _
  $region15: #{simulator_forward.1} parent=0 // pred_check_branch
    %112 = sbr.rel (0) target = $region17
  $region16: #{simulator_forward.1} parent=0 // pred_region
    _
  $region17: #{simulator_forward.1} parent=0 // pred_fallthru
    _
  // Predicated region
  $region18: #{simulator_forward.1} parent=0 // pred_check
    _
  $region19: #{simulator_forward.1} parent=0 // pred_check_branch
    %114 = sbr.rel (0) target = $region21
  $region20: #{simulator_forward.1} parent=0 // pred_region
    _
  $region21: #{simulator_forward.1} parent=0 // pred_fallthru
    _

</llo_original>
